<compile_context>
chip_gen: v7x
topology: tpu7x:2x2x1
jax: 0.10.0
libtpu: 0.0.40
codegen_flags: <defaults>
</compile_context>

<pallas_src>
import functools

import jax
import jax.numpy as jnp
from jax import lax
from jax.experimental import pallas as pl
from jax.experimental.pallas import tpu as pltpu


def _focal_loss_kernel(x_ref, y_ref, alpha_ref, loss_ref, cnt_ref, *,
                       gamma, ignore_index, use_alpha):
    j = pl.program_id(1)

    @pl.when(j == 0)
    def _():
        loss_ref[...] = jnp.zeros_like(loss_ref)
        cnt_ref[...] = jnp.zeros_like(cnt_ref)

    x = x_ref[...].astype(jnp.float32)      # (1, C, T) logits (native dtype -> f32)
    y = y_ref[...]                          # (1, 1, T) int32 labels

    # log-softmax over the class (sublane) axis; pixels stay lane-dense.
    m = jnp.max(x, axis=1, keepdims=True)                    # (1, 1, T)
    z = x - m
    sum_exp = jnp.sum(jnp.exp(z), axis=1, keepdims=True)     # (1, 1, T)

    # One-hot gather of the target logit (and optional per-class weight).
    classes = lax.broadcasted_iota(jnp.int32, x.shape, 1)    # (1, C, T)
    onehot = classes == y                                    # (1, C, T)
    z_t = jnp.sum(jnp.where(onehot, z, 0.0), axis=1, keepdims=True)   # x_y - m
    log_pt = z_t - jnp.log(sum_exp)                                    # (1, 1, T)

    if use_alpha:
        alpha = alpha_ref[...]                               # (1, C, 1)
        alpha_y = jnp.sum(jnp.where(onehot, alpha, 0.0), axis=1, keepdims=True)
        ce = -alpha_y * log_pt                               # NLLLoss(weight=alpha)
    else:
        ce = -log_pt

    if gamma == 0.0:
        per_px = ce                                          # no extra transcendentals
    else:
        pt = jnp.exp(log_pt)
        one_minus_pt = 1.0 - pt
        g_int = int(gamma)
        if float(g_int) == float(gamma) and 1 <= g_int <= 8:
            focal = one_minus_pt                             # repeated VPU multiplies
            for _ in range(g_int - 1):
                focal = focal * one_minus_pt
        else:
            focal = jnp.power(one_minus_pt, jnp.float32(gamma))
        per_px = focal * ce

    valid = y != ignore_index                                # (1, 1, T)
    loss_ref[...] += jnp.where(valid, per_px, 0.0)           # lane-wide partial sums
    cnt_ref[...] += valid.astype(jnp.float32)


def _vmem_capacity_bytes():
    try:
        return int(pltpu.get_tpu_info().vmem_capacity_bytes)
    except Exception:
        return 64 * 1024 * 1024   # conservative default (v7x per-core VMEM)


def _auto_tile_hw(c, hw, itemsize, vmem_cap):
    """Largest spatial (lane) tile that fits a conservative VMEM budget."""
    if hw <= 128:
        return hw
    budget = vmem_cap // 5                              # leave room for double-buffering
    per_lane = c * (2 * itemsize + 8 * 4) + 48          # dbl-buffered x + f32 temps + y/outs
    t = int(budget // max(per_lane, 1))
    t = max(128, min(t, 128 * 1024))
    t = (t // 128) * 128
    return min(t, (hw // 128) * 128)


def focal_loss(x, y, alpha=None, gamma=0.0, reduction="mean", ignore_index=-100, *,
               tile_hw=None):
    """Pallas implementation of FocalLoss.forward.

    x: (B, C) or (B, C, d1, ..., dK) raw logits (classes on axis 1).
    y: (B,)   or (B, d1, ..., dK)    integer class labels (ignore_index allowed).
    """
    if reduction not in ("mean", "sum", "none"):
        raise ValueError('Reduction must be one of: "mean", "sum", "none".')
    # TODO(synk): reduction='none' returns a data-dependent-length vector in PyTorch
    # (only unignored rows); not expressible with static shapes, so only 'mean'/'sum'.
    if reduction == "none":
        raise NotImplementedError("reduction='none' is not supported in the Pallas port")

    if x.ndim > 2:
        b, c = x.shape[0], x.shape[1]
        hw = 1
        for d in x.shape[2:]:
            hw *= d
        x3 = x.reshape(b, c, hw)            # trailing-dim merge: no transpose, no copy
        y2 = y.reshape(b, hw)
    elif x.ndim == 2:
        # TODO(synk): a dedicated row-major path could avoid this small transpose.
        b, c, hw = 1, x.shape[1], x.shape[0]
        x3 = x.T.reshape(1, c, hw)
        y2 = y.reshape(1, hw)
    else:
        raise ValueError("x must be (B, C) or (B, C, d1, ..., dK)")

    itemsize = jnp.dtype(x3.dtype).itemsize
    vmem_cap = _vmem_capacity_bytes()

    thw = tile_hw if tile_hw is not None else _auto_tile_hw(c, hw, itemsize, vmem_cap)
    if hw <= 128:
        thw = hw
    elif thw != hw:
        thw = max(128, (min(int(thw), hw) // 128) * 128)

    n_j = pl.cdiv(hw, thw)
    hw_pad = n_j * thw

    # Labels: pad (cheap: 1/C of the logits bytes) so padded / out-of-bounds logits
    # lanes carry ignore_index and contribute nothing.
    y3 = y2.astype(jnp.int32).reshape(b, 1, hw)
    if hw_pad != hw:
        y3 = jnp.pad(y3, ((0, 0), (0, 0), (0, hw_pad - hw)),
                     constant_values=ignore_index)

    use_alpha = alpha is not None
    if use_alpha:
        alpha3 = jnp.asarray(alpha, jnp.float32).reshape(1, c, 1)
    else:
        alpha3 = jnp.ones((1, c, 1), jnp.float32)

    needed = (2 * c * thw * itemsize        # double-buffered logits block
              + 2 * thw * 4                 # labels block (int32)
              + 2 * 2 * thw * 4             # two f32 partial-sum outputs
              + 2 * c * 4                   # alpha
              + 8 * c * thw * 4)            # headroom for f32 temporaries
    vmem_limit = int(min(vmem_cap * 3 // 4, max(needed, 32 * 1024 * 1024)))

    kernel = functools.partial(_focal_loss_kernel, gamma=float(gamma),
                               ignore_index=int(ignore_index), use_alpha=use_alpha)

    loss_part, cnt_part = pl.pallas_call(
        kernel,
        out_shape=(
            jax.ShapeDtypeStruct((b, 1, thw), jnp.float32),
            jax.ShapeDtypeStruct((b, 1, thw), jnp.float32),
        ),
        grid_spec=pltpu.PrefetchScalarGridSpec(
            num_scalar_prefetch=0,
            grid=(b, n_j),
            in_specs=[
                pl.BlockSpec((1, c, thw), lambda bb, j: (bb, 0, j)),   # logits (native dtype)
                pl.BlockSpec((1, 1, thw), lambda bb, j: (bb, 0, j)),   # labels
                pl.BlockSpec((1, c, 1), lambda bb, j: (0, 0, 0)),      # per-class weights
            ],
            out_specs=(
                pl.BlockSpec((1, 1, thw), lambda bb, j: (bb, 0, 0)),   # loss partials
                pl.BlockSpec((1, 1, thw), lambda bb, j: (bb, 0, 0)),   # count partials
            ),
        ),
        compiler_params=pltpu.CompilerParams(
            dimension_semantics=("parallel", "arbitrary"),
            vmem_limit_bytes=vmem_limit,
        ),
    )(x3, y3, alpha3)

    total = jnp.sum(loss_part)
    cnt = jnp.sum(cnt_part)
    if reduction == "mean":
        return jnp.where(cnt > 0, total / jnp.maximum(cnt, 1.0), jnp.float32(0.0))
    return jnp.where(cnt > 0, total, jnp.float32(0.0))   # 'sum'


def _focal_loss_ref(x, y, alpha, gamma, ignore_index, reduction="mean"):
    """Pure-JAX reference mirroring the PyTorch module."""
    if x.ndim > 2:
        c = x.shape[1]
        x = jnp.moveaxis(x, 1, -1).reshape(-1, c)
        y = y.reshape(-1)
    valid = y != ignore_index
    log_p = jax.nn.log_softmax(x.astype(jnp.float32), axis=-1)
    y_safe = jnp.where(valid, y, 0)
    log_pt = jnp.take_along_axis(log_p, y_safe[:, None], axis=-1)[:, 0]
    alpha_y = alpha[y_safe]
    ce = -alpha_y * log_pt
    pt = jnp.exp(log_pt)
    loss = ((1.0 - pt) ** gamma) * ce
    loss = jnp.where(valid, loss, 0.0)
    cnt = jnp.sum(valid.astype(jnp.float32))
    if reduction == "mean":
        return jnp.where(cnt > 0, jnp.sum(loss) / jnp.maximum(cnt, 1.0), 0.0)
    return jnp.sum(loss)


if __name__ == "__main__":
    key = jax.random.PRNGKey(0)
    kx, ky, km = jax.random.split(key, 3)

    B, C, H, W = 2, 4, 16, 16
    gamma = 2.0
    ignore_index = -100
    alpha = jnp.linspace(0.5, 2.0, C, dtype=jnp.float32)

    x = jax.random.normal(kx, (B, C, H, W), dtype=jnp.float32)
    y = jax.random.randint(ky, (B, H, W), 0, C, dtype=jnp.int32)
    ignore_mask = jax.random.uniform(km, (B, H, W)) < 0.1
    y = jnp.where(ignore_mask, ignore_index, y)

    out = focal_loss(x, y, alpha=alpha, gamma=gamma, reduction="mean",
                     ignore_index=ignore_index)
    out = jax.block_until_ready(out)
    ref = _focal_loss_ref(x, y, alpha, gamma, ignore_index, reduction="mean")
    assert jnp.allclose(out, ref, rtol=1e-5, atol=1e-5), (out, ref)

    # 2-D (batch, classes) path + gamma==0 fast path + reduction='sum'.
    x2 = jax.random.normal(kx, (8, C), dtype=jnp.float32)
    y2 = jax.random.randint(ky, (8,), 0, C, dtype=jnp.int32)
    y2 = y2.at[0].set(ignore_index)
    out2 = focal_loss(x2, y2, alpha=None, gamma=0.0, reduction="sum",
                      ignore_index=ignore_index)
    out2 = jax.block_until_ready(out2)
    ref2 = _focal_loss_ref(x2, y2, jnp.ones((C,), jnp.float32), 0.0,
                           ignore_index, reduction="sum")
    assert jnp.allclose(out2, ref2, rtol=1e-5, atol=1e-5), (out2, ref2)

    print("KERNEL_OK")
</pallas_src>

<mosaic_0001>
module attributes {stable_mosaic.version = 11 : i64} {
  func.func @_focal_loss_kernel(%arg0: i32, %arg1: i32, %arg2: memref<1x4x256xf32, #tpu.memory_space<vmem>>, %arg3: memref<1x1x256xi32, #tpu.memory_space<vmem>>, %arg4: memref<1x4x1xf32, #tpu.memory_space<vmem>>, %arg5: memref<1x1x256xf32, #tpu.memory_space<vmem>>, %arg6: memref<1x1x256xf32, #tpu.memory_space<vmem>>) attributes {dimension_semantics = [#tpu.dimension_semantics<parallel>, #tpu.dimension_semantics<arbitrary>], iteration_bounds = array<i64: 2, 1>, scalar_prefetch = 0 : i64, scratch_operands = 0 : i64, tpu.core_type = #tpu.core_type<tc>, window_params = [{transform_indices = @transform_0, window_bounds = array<i64: 1, 4, 256>}, {transform_indices = @transform_1, window_bounds = array<i64: 1, 1, 256>}, {pipeline_mode = #tpu.pipeline_mode<synchronous>, transform_indices = @transform_2, window_bounds = array<i64: 1, 4, 1>}, {transform_indices = @transform_3, window_bounds = array<i64: 1, 1, 256>}, {transform_indices = @transform_4, window_bounds = array<i64: 1, 1, 256>}]} {
    %c0_i32 = arith.constant 0 : i32
    %0 = arith.cmpi eq, %arg1, %c0_i32 : i32
    %1 = arith.extui %0 : i1 to i32
    %c0_i32_0 = arith.constant 0 : i32
    %2 = arith.cmpi ne, %1, %c0_i32_0 : i32
    scf.if %2 {
      %cst_29 = arith.constant 0.000000e+00 : f32
      %48 = vector.broadcast %cst_29 : f32 to vector<1x1x256xf32>
      %c0_30 = arith.constant 0 : index
      %c0_31 = arith.constant 0 : index
      %c0_32 = arith.constant 0 : index
      %49 = vector.load %arg5[%c0_30, %c0_31, %c0_32] : memref<1x1x256xf32, #tpu.memory_space<vmem>>, vector<1x1x256xf32>
      tpu.vector_store %arg5[%c0_30, %c0_31, %c0_32], %48 {strides = array<i32>} : memref<1x1x256xf32, #tpu.memory_space<vmem>>, vector<1x1x256xf32>,
      %cst_33 = arith.constant 0.000000e+00 : f32
      %50 = vector.broadcast %cst_33 : f32 to vector<1x1x256xf32>
      %c0_34 = arith.constant 0 : index
      %c0_35 = arith.constant 0 : index
      %c0_36 = arith.constant 0 : index
      %51 = vector.load %arg6[%c0_34, %c0_35, %c0_36] : memref<1x1x256xf32, #tpu.memory_space<vmem>>, vector<1x1x256xf32>
      tpu.vector_store %arg6[%c0_34, %c0_35, %c0_36], %50 {strides = array<i32>} : memref<1x1x256xf32, #tpu.memory_space<vmem>>, vector<1x1x256xf32>,
    } else {
    }
    %c0 = arith.constant 0 : index
    %c0_1 = arith.constant 0 : index
    %c0_2 = arith.constant 0 : index
    %3 = vector.load %arg2[%c0, %c0_1, %c0_2] : memref<1x4x256xf32, #tpu.memory_space<vmem>>, vector<1x4x256xf32>
    %c0_3 = arith.constant 0 : index
    %c0_4 = arith.constant 0 : index
    %c0_5 = arith.constant 0 : index
    %4 = vector.load %arg3[%c0_3, %c0_4, %c0_5] : memref<1x1x256xi32, #tpu.memory_space<vmem>>, vector<1x1x256xi32>
    %cst = arith.constant dense<0xFF800000> : vector<1x256xf32>
    %5 = vector.multi_reduction <maximumf>, %3, %cst [1] : vector<1x4x256xf32> to vector<1x256xf32>
    %6 = vector.shape_cast %5 : vector<1x256xf32> to vector<1x1x256xf32>
    %7 = vector.broadcast %6 : vector<1x1x256xf32> to vector<1x4x256xf32>
    %8 = arith.subf %3, %7 : vector<1x4x256xf32>
    %9 = math.exp %8 : vector<1x4x256xf32>
    %cst_6 = arith.constant dense<0.000000e+00> : vector<1x256xf32>
    %10 = vector.multi_reduction <add>, %9, %cst_6 [1] : vector<1x4x256xf32> to vector<1x256xf32>
    %11 = vector.shape_cast %10 : vector<1x256xf32> to vector<1x1x256xf32>
    %12 = tpu.iota {dimensions = array<i32: 1>} : vector<1x4x256xi32>
    %13 = vector.broadcast %4 : vector<1x1x256xi32> to vector<1x4x256xi32>
    %14 = arith.cmpi eq, %12, %13 : vector<1x4x256xi32>
    %cst_7 = arith.constant 0.000000e+00 : f32
    %15 = vector.broadcast %cst_7 : f32 to vector<1x4x256xf32>
    %16 = arith.select %14, %8, %15 : vector<1x4x256xi1>, vector<1x4x256xf32>
    %cst_8 = arith.constant dense<0.000000e+00> : vector<1x256xf32>
    %17 = vector.multi_reduction <add>, %16, %cst_8 [1] : vector<1x4x256xf32> to vector<1x256xf32>
    %18 = vector.shape_cast %17 : vector<1x256xf32> to vector<1x1x256xf32>
    %19 = math.log %11 : vector<1x1x256xf32>
    %20 = arith.subf %18, %19 : vector<1x1x256xf32>
    %c0_9 = arith.constant 0 : index
    %c0_10 = arith.constant 0 : index
    %c0_11 = arith.constant 0 : index
    %21 = vector.load %arg4[%c0_9, %c0_10, %c0_11] : memref<1x4x1xf32, #tpu.memory_space<vmem>>, vector<1x4x1xf32>
    %cst_12 = arith.constant 0.000000e+00 : f32
    %22 = vector.shape_cast %21 : vector<1x4x1xf32> to vector<1x4x1xf32>
    %23 = vector.broadcast %22 : vector<1x4x1xf32> to vector<1x4x256xf32>
    %24 = vector.broadcast %cst_12 : f32 to vector<1x4x256xf32>
    %25 = arith.select %14, %23, %24 : vector<1x4x256xi1>, vector<1x4x256xf32>
    %cst_13 = arith.constant dense<0.000000e+00> : vector<1x256xf32>
    %26 = vector.multi_reduction <add>, %25, %cst_13 [1] : vector<1x4x256xf32> to vector<1x256xf32>
    %27 = vector.shape_cast %26 : vector<1x256xf32> to vector<1x1x256xf32>
    %cst_14 = arith.constant 0.000000e+00 : f32
    %28 = vector.broadcast %cst_14 : f32 to vector<1x1x256xf32>
    %29 = arith.subf %28, %27 : vector<1x1x256xf32>
    %30 = arith.mulf %29, %20 : vector<1x1x256xf32>
    %31 = math.exp %20 : vector<1x1x256xf32>
    %cst_15 = arith.constant 1.000000e+00 : f32
    %32 = vector.broadcast %cst_15 : f32 to vector<1x1x256xf32>
    %33 = arith.subf %32, %31 : vector<1x1x256xf32>
    %34 = arith.mulf %33, %33 : vector<1x1x256xf32>
    %35 = arith.mulf %34, %30 : vector<1x1x256xf32>
    %c-100_i32 = arith.constant -100 : i32
    %36 = vector.broadcast %c-100_i32 : i32 to vector<1x1x256xi32>
    %37 = arith.cmpi ne, %4, %36 : vector<1x1x256xi32>
    %c0_16 = arith.constant 0 : index
    %c0_17 = arith.constant 0 : index
    %c0_18 = arith.constant 0 : index
    %38 = vector.load %arg5[%c0_16, %c0_17, %c0_18] : memref<1x1x256xf32, #tpu.memory_space<vmem>>, vector<1x1x256xf32>
    %cst_19 = arith.constant 0.000000e+00 : f32
    %39 = vector.broadcast %cst_19 : f32 to vector<1x1x256xf32>
    %40 = arith.select %37, %35, %39 : vector<1x1x256xi1>, vector<1x1x256xf32>
    %41 = arith.addf %38, %40 : vector<1x1x256xf32>
    %c0_20 = arith.constant 0 : index
    %c0_21 = arith.constant 0 : index
    %c0_22 = arith.constant 0 : index
    %42 = vector.load %arg5[%c0_20, %c0_21, %c0_22] : memref<1x1x256xf32, #tpu.memory_space<vmem>>, vector<1x1x256xf32>
    tpu.vector_store %arg5[%c0_20, %c0_21, %c0_22], %41 {strides = array<i32>} : memref<1x1x256xf32, #tpu.memory_space<vmem>>, vector<1x1x256xf32>,
    %c0_23 = arith.constant 0 : index
    %c0_24 = arith.constant 0 : index
    %c0_25 = arith.constant 0 : index
    %43 = vector.load %arg6[%c0_23, %c0_24, %c0_25] : memref<1x1x256xf32, #tpu.memory_space<vmem>>, vector<1x1x256xf32>
    %44 = arith.extui %37 : vector<1x1x256xi1> to vector<1x1x256xi32>
    %45 = arith.sitofp %44 : vector<1x1x256xi32> to vector<1x1x256xf32>
    %46 = arith.addf %43, %45 : vector<1x1x256xf32>
    %c0_26 = arith.constant 0 : index
    %c0_27 = arith.constant 0 : index
    %c0_28 = arith.constant 0 : index
    %47 = vector.load %arg6[%c0_26, %c0_27, %c0_28] : memref<1x1x256xf32, #tpu.memory_space<vmem>>, vector<1x1x256xf32>
    tpu.vector_store %arg6[%c0_26, %c0_27, %c0_28], %46 {strides = array<i32>} : memref<1x1x256xf32, #tpu.memory_space<vmem>>, vector<1x1x256xf32>,
    return
  }
  func.func @transform_0(%arg0: i32, %arg1: i32) -> (i32, i32, i32) {
    %c0_i32 = arith.constant 0 : i32
    %c0_i32_0 = arith.constant 0 : i32
    return %arg0, %c0_i32, %arg1 : i32, i32, i32
  }
  func.func @transform_1(%arg0: i32, %arg1: i32) -> (i32, i32, i32) {
    %c0_i32 = arith.constant 0 : i32
    %c0_i32_0 = arith.constant 0 : i32
    return %arg0, %c0_i32, %arg1 : i32, i32, i32
  }
  func.func @transform_2(%arg0: i32, %arg1: i32) -> (i32, i32, i32) {
    %c0_i32 = arith.constant 0 : i32
    %c0_i32_0 = arith.constant 0 : i32
    %c0_i32_1 = arith.constant 0 : i32
    %c0_i32_2 = arith.constant 0 : i32
    return %c0_i32, %c0_i32_0, %c0_i32_1 : i32, i32, i32
  }
  func.func @transform_3(%arg0: i32, %arg1: i32) -> (i32, i32, i32) {
    %c0_i32 = arith.constant 0 : i32
    %c0_i32_0 = arith.constant 0 : i32
    %c0_i32_1 = arith.constant 0 : i32
    return %arg0, %c0_i32, %c0_i32_0 : i32, i32, i32
  }
  func.func @transform_4(%arg0: i32, %arg1: i32) -> (i32, i32, i32) {
    %c0_i32 = arith.constant 0 : i32
    %c0_i32_0 = arith.constant 0 : i32
    %c0_i32_1 = arith.constant 0 : i32
    return %arg0, %c0_i32, %c0_i32_0 : i32, i32, i32
  }
}

</mosaic_0001>

<llo_original>
// kernel: tpu_custom_call.1
$region0: #{tpu_custom_call.1}
  #allocation0 [shape = 'u32[]', space=smem, size = 0x4, offset = 0x4, fixed_abs, tag = 'smem constant byte address 0x4 - core index']
  #allocation1 [shape = 'u32[144,128]{1,0:T(1,128)}', space=vmem, size = 0x12000, scoped, tag = 'internal scratch']
  %s0 = inlined_call_operand.hbm [shape: f32[2,4,256], index: 0, kind: input, shape index: {}]
  %s1 = inlined_call_operand.vmem [shape: s32[2,1,256], index: 1, kind: input, shape index: {}]
  %s2 = inlined_call_operand.vmem [shape: f32[1,4,1], index: 2, kind: input, shape index: {}]
  %s3 = inlined_call_operand.hbm [shape: f32[2,1,256], index: 3, kind: output, shape index: {0}]
  %s4 = inlined_call_operand.hbm [shape: f32[2,1,256], index: 4, kind: output, shape index: {1}]
  %5 = xla_tuple %s3, %s4
  %s6 = sld [smem:[#allocation0]]
  $region61: #{tpu_custom_call.1} parent=0
    _
  %s8 = ssub.s32 1, %s6
  %s9 = scalar_select 0, %s8, %s6
  $region1: #{tpu_custom_call.1} parent=0
    #allocation2 [shape = 'u8[8192]{0}', space=vmem, size = 0x2000, scoped, tag = 'input window, operand 0']
    #allocation3 [shape = 's32[2]{0}', space=sflag, size = 0x8, scoped, tag = 'scoped memory for tpu_custom_call.1']
    #allocation4 [shape = 's32[2]{0}', space=sflag, size = 0x8, scoped, tag = 'scoped memory for tpu_custom_call.1']
    #allocation5 [shape = 'u8[2048]{0}', space=vmem, size = 0x800, scoped, tag = 'output window, operand 0']
    #allocation6 [shape = 'u8[2048]{0}', space=vmem, size = 0x800, scoped, tag = 'output window, operand 1']
    #allocation7 [shape = 's32[2]{0}', space=sflag, size = 0x8, scoped, tag = 'scoped memory for tpu_custom_call.1']
    %10 = vsyncpa [#allocation3], 0
    %s11 = scalar_lea.sflag [#allocation3], 1
    %12 = vsyncpa %s11, 0
    %13 = vsyncpa [#allocation4], 0
    %s14 = scalar_lea.sflag [#allocation4], 1
    %15 = vsyncpa %s14, 0
    %16 = vsyncpa [#allocation7], 0
    %s17 = scalar_lea.sflag [#allocation7], 1
    %18 = vsyncpa %s17, 0
    loop: start=0, step=1, limit=4
    $region2: #{tpu_custom_call.1} parent=1 // loop_pre_header
      _
    $region3: #{tpu_custom_call.1} parent=1 // loop_header
      %s20 = sphi 0, %s24
      %p21 = scmp.ge.s32.totalorder %s20, 4
      %s27 = sphi 0, %s39
      %s28 = sphi 0, %s35
      %s29 = sphi 0, %s27
      %s30 = sphi 0, %s28
      %s31 = sphi 0, %s29
      %s32 = sphi 0, %s30
      %s44 = sphi 0, %s46
      %s47 = sphi 0, %s44
      %s48 = sphi 0, %s47
      %s64 = sphi 0, %s48
      %s72 = sphi 0, %s74
      %s75 = sphi 0, %s72
      %s76 = sphi 0, %s75
      %s92 = sphi 0, %s76
      %s96 = sphi 0, %s96
      %s98 = sphi 0, %s96
      %s99 = sphi 0, %s98
      %s113 = sphi 0, %s99
      %s119 = sphi 0, %s121
      %s122 = sphi 0, %s119
      %s123 = sphi 0, %s122
      %s139 = sphi 0, %s123
      %s145 = sphi 0, %s147
      %s148 = sphi 0, %s145
      %s149 = sphi 0, %s148
      %s165 = sphi 0, %s149
    $region4: #{tpu_custom_call.1} parent=1 // loop_header_branch
      %23 = sbr.rel (%p21) target = $region8
    $region5: #{tpu_custom_call.1} parent=1 // loop_body
      %s25 = ssub.s32 %s20, 1
      %s26 = ssub.s32 %s20, 2
      %s33 = sadd.s32 1, %s28
      %p34 = scmp.ge.s32.totalorder %s33, 1
      %s35 = scalar_select %p34, 0, %s33
      %s36 = sadd.s32 1, %s27
      %s37 = scalar_select %p34, %s36, %s27
      %p38 = scmp.ge.s32.totalorder %s37, 2
      %s39 = scalar_select %p38, 0, %s37
      %s40 = ssub.s32 %s27, %s39
      %s41 = ssub.s32 %s28, %s35
      %s42 = sor.u32 %s40, %s41
      %p43 = scmp.eq.s32.totalorder %s42, 0
      %s45 = sadd.s32 %s44, 1
      %s46 = scalar_select %p43, %s44, %s45
      %p49 = pneg %p43
      %p50 = scmp.eq.s32.totalorder %s20, 1
      %p51 = por %p49, %p50
      %p52 = scmp.ne.s32.totalorder %s44, %s47
      %p53 = scmp.eq.s32.totalorder %s20, 0
      %p54 = por %p52, %p53
      %p55 = scmp.ne.s32.totalorder %s44, %s47
      %p56 = scmp.eq.s32.totalorder %s25, 1
      %p57 = por %p55, %p56
      %p58 = scmp.ne.s32.totalorder %s47, %s48
      %p59 = scmp.eq.s32.totalorder %s25, 0
      %p60 = por %p58, %p59
      %p61 = scmp.ne.s32.totalorder %s47, %s48
      %p62 = scmp.eq.s32.totalorder %s26, 1
      %p63 = por %p61, %p62
      %p65 = scmp.ne.s32.totalorder %s48, %s64
      %p66 = scmp.eq.s32.totalorder %s26, 0
      %p67 = por %p65, %p66
      %s68 = ssub.s32 %s27, %s39
      %s69 = ssub.s32 %s28, %s35
      %s70 = sor.u32 %s68, %s69
      %p71 = scmp.eq.s32.totalorder %s70, 0
      %s73 = sadd.s32 %s72, 1
      %s74 = scalar_select %p71, %s72, %s73
      %p77 = pneg %p71
      %p78 = scmp.eq.s32.totalorder %s20, 1
      %p79 = por %p77, %p78
      %p80 = scmp.ne.s32.totalorder %s72, %s75
      %p81 = scmp.eq.s32.totalorder %s20, 0
      %p82 = por %p80, %p81
      %p83 = scmp.ne.s32.totalorder %s72, %s75
      %p84 = scmp.eq.s32.totalorder %s25, 1
      %p85 = por %p83, %p84
      %p86 = scmp.ne.s32.totalorder %s75, %s76
      %p87 = scmp.eq.s32.totalorder %s25, 0
      %p88 = por %p86, %p87
      %p89 = scmp.ne.s32.totalorder %s75, %s76
      %p90 = scmp.eq.s32.totalorder %s26, 1
      %p91 = por %p89, %p90
      %p93 = scmp.ne.s32.totalorder %s76, %s92
      %p94 = scmp.eq.s32.totalorder %s26, 0
      %p95 = por %p93, %p94
      %s97 = sadd.s32 %s96, 1
      %p100 = scmp.eq.s32.totalorder %s20, 1
      %p101 = scmp.ne.s32.totalorder %s96, %s98
      %p102 = scmp.eq.s32.totalorder %s20, 0
      %p103 = por %p101, %p102
      %p104 = scmp.ne.s32.totalorder %s96, %s98
      %p105 = scmp.eq.s32.totalorder %s25, 1
      %p106 = por %p104, %p105
      %p107 = scmp.ne.s32.totalorder %s98, %s99
      %p108 = scmp.eq.s32.totalorder %s25, 0
      %p109 = por %p107, %p108
      %p110 = scmp.ne.s32.totalorder %s98, %s99
      %p111 = scmp.eq.s32.totalorder %s26, 1
      %p112 = por %p110, %p111
      %p114 = scmp.ne.s32.totalorder %s99, %s113
      %p115 = scmp.eq.s32.totalorder %s26, 0
      %p116 = por %p114, %p115
      %s117 = ssub.s32 %s27, %s39
      %p118 = scmp.eq.s32.totalorder %s117, 0
      %s120 = sadd.s32 %s119, 1
      %s121 = scalar_select %p118, %s119, %s120
      %p124 = pneg %p118
      %p125 = scmp.eq.s32.totalorder %s20, 1
      %p126 = por %p124, %p125
      %p127 = scmp.ne.s32.totalorder %s119, %s122
      %p128 = scmp.eq.s32.totalorder %s20, 0
      %p129 = por %p127, %p128
      %p130 = scmp.ne.s32.totalorder %s119, %s122
      %p131 = scmp.eq.s32.totalorder %s25, 1
      %p132 = por %p130, %p131
      %p133 = scmp.ne.s32.totalorder %s122, %s123
      %p134 = scmp.eq.s32.totalorder %s25, 0
      %p135 = por %p133, %p134
      %p136 = scmp.ne.s32.totalorder %s122, %s123
      %p137 = scmp.eq.s32.totalorder %s26, 1
      %p138 = por %p136, %p137
      %p140 = scmp.ne.s32.totalorder %s123, %s139
      %p141 = scmp.eq.s32.totalorder %s26, 0
      %p142 = por %p140, %p141
      %s143 = ssub.s32 %s27, %s39
      %p144 = scmp.eq.s32.totalorder %s143, 0
      %s146 = sadd.s32 %s145, 1
      %s147 = scalar_select %p144, %s145, %s146
      %p150 = pneg %p144
      %p151 = scmp.eq.s32.totalorder %s20, 1
      %p152 = por %p150, %p151
      %p153 = scmp.ne.s32.totalorder %s145, %s148
      %p154 = scmp.eq.s32.totalorder %s20, 0
      %p155 = por %p153, %p154
      %p156 = scmp.ne.s32.totalorder %s145, %s148
      %p157 = scmp.eq.s32.totalorder %s25, 1
      %p158 = por %p156, %p157
      %p159 = scmp.ne.s32.totalorder %s148, %s149
      %p160 = scmp.eq.s32.totalorder %s25, 0
      %p161 = por %p159, %p160
      %p162 = scmp.ne.s32.totalorder %s148, %s149
      %p163 = scmp.eq.s32.totalorder %s26, 1
      %p164 = por %p162, %p163
      %p166 = scmp.ne.s32.totalorder %s149, %s165
      %p167 = scmp.eq.s32.totalorder %s26, 0
      %p168 = por %p166, %p167
      %p169 = scmp.le.s32.totalorder 1, %s20
      %p170 = scmp.lt.s32.totalorder %s20, 3
      %p171 = pnand %p169, %p170
      %p172 = pneg %p171
      // Predicated region
      $region9: #{tpu_custom_call.1} parent=5 // pred_check
        _
      $region10: #{tpu_custom_call.1} parent=5 // pred_check_branch
        %174 = sbr.rel (%p171) target = $region12
      $region11: #{tpu_custom_call.1} parent=5 // pred_region
        %s175 = ssub.s32 %s20, 1
        // Predicated region
        $region13: #{tpu_custom_call.1} parent=11 // pred_check
          %p176 = pneg %p109
        $region14: #{tpu_custom_call.1} parent=11 // pred_check_branch
          %178 = sbr.rel (%p176) target = $region16
        $region15: #{tpu_custom_call.1} parent=11 // pred_region
          _
        $region16: #{tpu_custom_call.1} parent=11 // pred_fallthru
          _
      $region12: #{tpu_custom_call.1} parent=5 // pred_fallthru
        _
      %p179 = scmp.lt.s32.totalorder %s20, 2
      // Predicated region
      $region17: #{tpu_custom_call.1} parent=5 // pred_check
        %p180 = pneg %p179
      $region18: #{tpu_custom_call.1} parent=5 // pred_check_branch
        %182 = sbr.rel (%p180) target = $region20
      $region19: #{tpu_custom_call.1} parent=5 // pred_region
        // Predicated region
        $region21: #{tpu_custom_call.1} parent=19 // pred_check
          %p183 = pneg %p54
        $region22: #{tpu_custom_call.1} parent=19 // pred_check_branch
          %185 = sbr.rel (%p183) target = $region24
        $region23: #{tpu_custom_call.1} parent=19 // pred_region
          %s186 = sand.u32 %s44, 1
          %s187 = scalar_lea.sflag [#allocation3], %s186
          %s188 = sand.u32 %s44, 1
          %s189 = smul.addr %s188, 8
          %s190 = scalar_lea.vmem [#allocation2], %s189
          %s191 = smul.u32 2, %s28
          %s193 = ssub.s32 128, 128
          %194 = vsyncadd %s187, %s193
          %s195 = smul.addr %s27, 2
          %s196 = sadd.s32 %s191, %s195
          %s197 = smul.addr %s196, 64
          %s198 = scalar_lea.hbm %s0, %s197
          %s200 = sshll.u32 %s190, 4
          %s201 = int_to_ptr.vmem [resolvable:$true] %s200
          %203 = dma.hbm_to_vmem [thread:$0]  %s198, 128, %s201, %s187
        $region24: #{tpu_custom_call.1} parent=19 // pred_fallthru
          _
        // Predicated region
        $region25: #{tpu_custom_call.1} parent=19 // pred_check
          %p204 = pneg %p82
        $region26: #{tpu_custom_call.1} parent=19 // pred_check_branch
          %206 = sbr.rel (%p204) target = $region28
        $region27: #{tpu_custom_call.1} parent=19 // pred_region
          %s207 = smul.u32 2, %s28
          %p208 = scmp.lt.s32.totalorder %s27, 1
          %s209 = scalar_select %p208, %s27, 1
          %p210 = scmp.lt.s32.totalorder %s207, 1
          %s211 = scalar_select %p210, %s207, 1
          %s212 = smul.addr %s209, 2
          %s213 = sadd.s32 %s211, %s212
          %s214 = scalar_lea.vmem %s1, %s213
          %s215 = smul.u32 2, %s28
        $region28: #{tpu_custom_call.1} parent=19 // pred_fallthru
          _
      $region20: #{tpu_custom_call.1} parent=5 // pred_fallthru
        _
      %p216 = scmp.le.s32.totalorder 1, %s20
      %p217 = scmp.lt.s32.totalorder %s20, 3
      %p218 = pnand %p216, %p217
      %p219 = pneg %p218
      // Predicated region
      $region29: #{tpu_custom_call.1} parent=5 // pred_check
        _
      $region30: #{tpu_custom_call.1} parent=5 // pred_check_branch
        %221 = sbr.rel (%p218) target = $region32
      $region31: #{tpu_custom_call.1} parent=5 // pred_region
        %s222 = ssub.s32 %s20, 1
        %s223 = sand.u32 %s47, 1
        %s224 = scalar_lea.sflag [#allocation3], %s223
        %s225 = sand.u32 %s47, 1
        %s226 = smul.addr %s225, 8
        %s227 = scalar_lea.vmem [#allocation2], %s226
        // Predicated region
        $region33: #{tpu_custom_call.1} parent=31 // pred_check
          %p228 = pneg %p60
        $region34: #{tpu_custom_call.1} parent=31 // pred_check_branch
          %230 = sbr.rel (%p228) target = $region36
        $region35: #{tpu_custom_call.1} parent=31 // pred_region
          %231 = dma.done %s224, 128
        $region36: #{tpu_custom_call.1} parent=31 // pred_fallthru
          _
        %s232 = sand.u32 %s47, 1
        %s233 = scalar_lea.sflag [#allocation3], %s232
        %s234 = sand.u32 %s47, 1
        %s235 = smul.addr %s234, 8
        %s236 = scalar_lea.vmem [#allocation2], %s235
        %p237 = pneg %p60
        %p238 = pneg %p57
        %s239 = smul.u32 2, %s30
        %p240 = scmp.lt.s32.totalorder %s29, 1
        %s241 = scalar_select %p240, %s29, 1
        %p242 = scmp.lt.s32.totalorder %s239, 1
        %s243 = scalar_select %p242, %s239, 1
        %s244 = smul.addr %s241, 2
        %s245 = sadd.s32 %s243, %s244
        %s246 = scalar_lea.vmem %s1, %s245
        %p247 = pneg %p88
        %p248 = pneg %p85
        %p249 = pneg %p109
        %p250 = pneg %p106
        %p251 = pneg %p135
        %p252 = pneg %p132
        %s253 = sand.u32 %s122, 1
        %s254 = scalar_lea.sflag [#allocation4], %s253
        %s255 = sand.u32 %s122, 1
        %s256 = smul.addr %s255, 2
        %s257 = scalar_lea.vmem [#allocation5], %s256
        %p258 = pneg %p161
        %p259 = pneg %p158
        %s260 = sand.u32 %s148, 1
        %s261 = scalar_lea.sflag [#allocation7], %s260
        %s262 = sand.u32 %s148, 1
        %s263 = smul.addr %s262, 2
        %s264 = scalar_lea.vmem [#allocation6], %s263
        %s265 = smul.u32 2, %s30
        %s266 = smul.u32 2, %s30
        %p267 = scmp.lt.s32.totalorder %s29, 1
        %s268 = scalar_select %p267, %s29, 1
        %p269 = scmp.lt.s32.totalorder %s266, 1
        %s270 = scalar_select %p269, %s266, 1
        %s271 = smul.addr %s268, 2
        %s272 = sadd.s32 %s270, %s271
        %s273 = scalar_lea.vmem %s1, %s272
        %s274 = smul.u32 2, %s30
        %p275 = scmp.eq.s32.totalorder %s30, 0
        // Predicated region
        $region37: #{tpu_custom_call.1} parent=31 // pred_check
          %p276 = pneg %p275
        $region38: #{tpu_custom_call.1} parent=31 // pred_check_branch
          %278 = sbr.rel (%p276) target = $region40
        $region39: #{tpu_custom_call.1} parent=31 // pred_region
          %v279 = vlaneseq
          %vm280 = vcmp.ge.s32.totalorder %v279, 0
          %vm281 = vcmp.lt.s32.totalorder %v279, 256
          %vm282 = vmand %vm280, %vm281
          %283 = vst.msk [vmem:[%s257] sm:$0x3] %vm282, 0.0
          %284 = vst.msk [vmem:[%s264] sm:$0x3] %vm282, 0.0
        $region40: #{tpu_custom_call.1} parent=31 // pred_fallthru
          _
        %v285 = vld [vmem:[%s227] sm:$0xff]
        %v286 = vld [vmem:[%s273] sm:$0x3]
        %v288 = vcombine.high %v285, %v285
        %vm290 = vcmask 1043456
        %v291 = vsel %vm290, %v285, -inf
        %v292 = vrot.slane %v291, 4
        %v293 = vmax.f32 %v291, %v292
        %v294 = vrot.slane %v293, 2
        %v295 = vmax.f32 %v293, %v294
        %v296 = vrot.slane %v295, 1
        %v297 = vmax.f32 %v295, %v296
        %v298 = vsel %vm290, %v288, -inf
        %v299 = vrot.slane %v298, 4
        %v300 = vmax.f32 %v298, %v299
        %v301 = vrot.slane %v300, 2
        %v302 = vmax.f32 %v300, %v301
        %v303 = vrot.slane %v302, 1
        %v304 = vmax.f32 %v302, %v303
        %v307 = vcombine.low %v297, %v304
        %v309 = vsub.f32 %v285, %v307
        %v310 = vmul.f32 %v309, 1.442695
        %v311 = vpow.pop %v310
        %v313 = vcombine.high %v311, %v311
        %v315 = vsel %vm290, %v311, 0.0
        %v316 = vrot.slane %v315, 4
        %v317 = vadd.f32 %v315, %v316
        %v318 = vrot.slane %v317, 2
        %v319 = vadd.f32 %v317, %v318
        %v320 = vrot.slane %v319, 1
        %v321 = vadd.f32 %v319, %v320
        %v322 = vsel %vm290, %v313, 0.0
        %v323 = vrot.slane %v322, 4
        %v324 = vadd.f32 %v322, %v323
        %v325 = vrot.slane %v324, 2
        %v326 = vadd.f32 %v324, %v325
        %v327 = vrot.slane %v326, 1
        %v328 = vadd.f32 %v326, %v327
        %v329 = vlaneseq
        %v330 = vshrl.u32 %v329, 7
        %v331 = vlaneseq
        %v332 = vshrl.u32 %v331, 7
        %v333 = vsub.s32 0, %v332
        %v334 = vrot.slane %v286, %v333
        %v335 = vlaneseq
        %v336 = vshrl.u32 %v335, 7
        %v337 = vsub.s32 1, %v336
        %v338 = vrot.slane %v286, %v337
        %vm339 = vcmp.eq.s32.totalorder %v330, %v334
        %vm340 = vcmp.eq.s32.totalorder %v330, %v338
        %v342 = vcombine.high %v309, %v309
        %v344 = vsel %vm339, %v309, 0.0
        %v345 = vsel %vm340, %v342, 0.0
        %v346 = vsel %vm290, %v344, 0.0
        %v347 = vrot.slane %v346, 4
        %v348 = vadd.f32 %v346, %v347
        %v349 = vrot.slane %v348, 2
        %v350 = vadd.f32 %v348, %v349
        %v351 = vrot.slane %v350, 1
        %v352 = vadd.f32 %v350, %v351
        %v353 = vsel %vm290, %v345, 0.0
        %v354 = vrot.slane %v353, 4
        %v355 = vadd.f32 %v353, %v354
        %v356 = vrot.slane %v355, 2
        %v357 = vadd.f32 %v355, %v356
        %v358 = vrot.slane %v357, 1
        %v359 = vadd.f32 %v357, %v358
        %v360 = vlog2.pop %v321
        %v361 = vmul.f32 %v360, 0.6931472
        %v362 = vlog2.pop %v328
        %v363 = vmul.f32 %v362, 0.6931472
        %v364 = vsub.f32 %v352, %v361
        %v365 = vsub.f32 %v359, %v363
        %v366 = vld [vmem:[%s2] sm:$0xf]
        %368 = vset.pattern.permute.xlu0 0
        %369 = vperm.xlu0 %368, %v366
        %v370 = vpop.permute.xlu0 %369
        %v372 = vsel %vm339, %v370, 0.0
        %v373 = vsel %vm340, %v370, 0.0
        %v374 = vsel %vm290, %v372, 0.0
        %v375 = vrot.slane %v374, 4
        %v376 = vadd.f32 %v374, %v375
        %v377 = vrot.slane %v376, 2
        %v378 = vadd.f32 %v376, %v377
        %v379 = vrot.slane %v378, 1
        %v380 = vadd.f32 %v378, %v379
        %v381 = vsel %vm290, %v373, 0.0
        %v382 = vrot.slane %v381, 4
        %v383 = vadd.f32 %v381, %v382
        %v384 = vrot.slane %v383, 2
        %v385 = vadd.f32 %v383, %v384
        %v386 = vrot.slane %v385, 1
        %v387 = vadd.f32 %v385, %v386
        %v388 = vsub.f32 0.0, %v380
        %v389 = vsub.f32 0.0, %v387
        %v390 = vmul.f32 %v388, %v364
        %v391 = vmul.f32 %v389, %v365
        %v392 = vmul.f32 %v364, 1.442695
        %v393 = vpow.pop %v392
        %v394 = vmul.f32 %v365, 1.442695
        %v395 = vpow.pop %v394
        %v396 = vsub.f32 1.0, %v393
        %v397 = vsub.f32 1.0, %v395
        %v398 = vmul.f32 %v396, %v396
        %v399 = vmul.f32 %v397, %v397
        %v400 = vmul.f32 %v398, %v390
        %v401 = vmul.f32 %v399, %v391
        %vm402 = vcmp.ne.s32.totalorder %v286, 4294967196
        %v403 = vld [vmem:[%s257] sm:$0x3]
        %v406 = vcombine.low %v400, %v401
        %v408 = vunpack.c.l.s4 1966171168
        %v409 = vunpack.c.0.s8 %v408
        %v410 = vlaneseq
        %v411 = vshrl.u32 %v410, 7
        %v412 = vsub.s32 %v409, %v411
        %v413 = vrot.slane %v406, %v412
        %v415 = vunpack.c.l.s4 1966171168
        %v416 = vunpack.c.0.s8 %v415
        %v417 = vlaneseq
        %v418 = vshrl.u32 %v417, 7
        %v419 = vsub.s32 %v416, %v418
        %v420 = vrot.slane %v413, %v419
        %v422 = vsel %vm402, %v420, 0.0
        %v423 = vadd.f32 %v403, %v422
        %v424 = vlaneseq
        %vm425 = vcmp.ge.s32.totalorder %v424, 0
        %vm426 = vcmp.lt.s32.totalorder %v424, 256
        %vm427 = vmand %vm425, %vm426
        %428 = vst.msk [vmem:[%s257] sm:$0x3] %vm427, %v423
        %v429 = vld [vmem:[%s264] sm:$0x3]
        %v430 = vsel %vm402, 1, 0
        %v431 = vcvt.s32.f32 %v430
        %v432 = vadd.f32 %v429, %v431
        %433 = vst.msk [vmem:[%s264] sm:$0x3] %vm427, %v432
        %s434 = sand.u32 %s122, 1
        %s435 = scalar_lea.sflag [#allocation4], %s434
        %s436 = sand.u32 %s122, 1
        %s437 = smul.addr %s436, 2
        %s438 = scalar_lea.vmem [#allocation5], %s437
        %s439 = sand.u32 %s148, 1
        %s440 = scalar_lea.sflag [#allocation7], %s439
        %s441 = sand.u32 %s148, 1
        %s442 = smul.addr %s441, 2
        %s443 = scalar_lea.vmem [#allocation6], %s442
        // Predicated region
        $region41: #{tpu_custom_call.1} parent=31 // pred_check
          %p444 = pneg %p132
        $region42: #{tpu_custom_call.1} parent=31 // pred_check_branch
          %446 = sbr.rel (%p444) target = $region44
        $region43: #{tpu_custom_call.1} parent=31 // pred_region
          %s448 = ssub.s32 32, 32
          %449 = vsyncadd %s435, %s448
          %s450 = smul.addr %s29, 2
          %s451 = smul.addr %s450, 16
          %s452 = scalar_lea.hbm %s3, %s451
          %s454 = sshll.u32 %s438, 4
          %s455 = int_to_ptr.vmem [resolvable:$true] %s454
          %457 = dma.vmem_to_hbm [thread:$0]  %s455, 32, %s452, %s435
        $region44: #{tpu_custom_call.1} parent=31 // pred_fallthru
          _
        // Predicated region
        $region45: #{tpu_custom_call.1} parent=31 // pred_check
          %p458 = pneg %p158
        $region46: #{tpu_custom_call.1} parent=31 // pred_check_branch
          %460 = sbr.rel (%p458) target = $region48
        $region47: #{tpu_custom_call.1} parent=31 // pred_region
          %s462 = ssub.s32 32, 32
          %463 = vsyncadd %s440, %s462
          %s464 = smul.addr %s29, 2
          %s465 = smul.addr %s464, 16
          %s466 = scalar_lea.hbm %s4, %s465
          %s468 = sshll.u32 %s443, 4
          %s469 = int_to_ptr.vmem [resolvable:$true] %s468
          %471 = dma.vmem_to_hbm [thread:$0]  %s469, 32, %s466, %s440
        $region48: #{tpu_custom_call.1} parent=31 // pred_fallthru
          _
      $region32: #{tpu_custom_call.1} parent=5 // pred_fallthru
        _
      %p472 = scmp.le.s32.totalorder 2, %s20
      // Predicated region
      $region49: #{tpu_custom_call.1} parent=5 // pred_check
        %p473 = pneg %p472
      $region50: #{tpu_custom_call.1} parent=5 // pred_check_branch
        %475 = sbr.rel (%p473) target = $region52
      $region51: #{tpu_custom_call.1} parent=5 // pred_region
        %s476 = ssub.s32 %s20, 2
        // Predicated region
        $region53: #{tpu_custom_call.1} parent=51 // pred_check
          %p477 = pneg %p138
        $region54: #{tpu_custom_call.1} parent=51 // pred_check_branch
          %479 = sbr.rel (%p477) target = $region56
        $region55: #{tpu_custom_call.1} parent=51 // pred_region
          %s480 = sand.u32 %s123, 1
          %s481 = scalar_lea.sflag [#allocation4], %s480
          %s482 = sand.u32 %s123, 1
          %s483 = smul.addr %s482, 2
          %s484 = scalar_lea.vmem [#allocation5], %s483
          %485 = dma.done %s481, 32
        $region56: #{tpu_custom_call.1} parent=51 // pred_fallthru
          _
        // Predicated region
        $region57: #{tpu_custom_call.1} parent=51 // pred_check
          %p486 = pneg %p164
        $region58: #{tpu_custom_call.1} parent=51 // pred_check_branch
          %488 = sbr.rel (%p486) target = $region60
        $region59: #{tpu_custom_call.1} parent=51 // pred_region
          %s489 = sand.u32 %s149, 1
          %s490 = scalar_lea.sflag [#allocation7], %s489
          %s491 = sand.u32 %s149, 1
          %s492 = smul.addr %s491, 2
          %s493 = scalar_lea.vmem [#allocation6], %s492
          %494 = dma.done %s490, 32
        $region60: #{tpu_custom_call.1} parent=51 // pred_fallthru
          _
      $region52: #{tpu_custom_call.1} parent=5 // pred_fallthru
        _
    $region6: #{tpu_custom_call.1} parent=1 // loop_footer
      %s24 = sadd.s32 1, %s20
    $region7: #{tpu_custom_call.1} parent=1 // loop_footer_branch
      %19 = sbr.rel target = $region3
    $region8: #{tpu_custom_call.1} parent=1 // loop_exit
      _
    %495 = vsyncpa [#allocation3], 1
    %s496 = scalar_lea.sflag [#allocation3], 1
    %497 = vsyncpa %s496, 1
    %498 = vsyncpa [#allocation4], 1
    %s499 = scalar_lea.sflag [#allocation4], 1
    %500 = vsyncpa %s499, 1
    %501 = vsyncpa [#allocation7], 1
    %s502 = scalar_lea.sflag [#allocation7], 1
    %503 = vsyncpa %s502, 1

</llo_original>
